<compile_context>
chip_gen: v7x
topology: tpu7x:2x2x1
jax: 0.10.0
libtpu: 0.0.40
codegen_flags: <defaults>
</compile_context>

<pallas_src>
import functools

import jax
import jax.numpy as jnp
from jax.experimental import pallas as pl
from jax.experimental.pallas import tpu as pltpu

LANE = 128


# --------------------------------------------------------------------------- #
# Kernel
# --------------------------------------------------------------------------- #
def _gru_seq_kernel(x_ref, h0_ref, wx_ref, wh_ref, bx_ref, bh_ref,
                    out_ref, h_state, *, hp):
    """One grid step == one GRU time step; hidden state lives in VMEM scratch.

    x_ref : (seq_len,)      f32 SMEM   token values (input_size == 1)
    h0_ref: (1, HP)         f32 VMEM   initial hidden (zero-padded)
    wx_ref: (1, 3*HP)       f32 VMEM   input weights  [r|z|n], pre-transposed
    wh_ref: (HP, 3*HP)      f32 VMEM   hidden weights [r|z|n], pre-transposed
    bx_ref: (1, 3*HP)       f32 VMEM   input bias
    bh_ref: (1, 3*HP)       f32 VMEM   hidden bias
    out_ref:(1, 1, HP)      f32 VMEM   this step's hidden state (== output)
    h_state:(1, HP)         f32 VMEM   carried hidden state scratch
    """
    t = pl.program_id(0)

    @pl.when(t == 0)
    def _():
        h_state[...] = h0_ref[...]

    h = h_state[...]                              # (1, HP)
    x_t = x_ref[t]                                # scalar token from SMEM

    # Input projection (K == 1): single VPU broadcast fma — no MXU push/pop.
    gi = x_t * wx_ref[...] + bx_ref[...]          # (1, 3*HP)

    # Hidden projection: ONE fused, lane-dense MXU matmul for all three gates.
    gh = jnp.dot(h, wh_ref[...],
                 preferred_element_type=jnp.float32) + bh_ref[...]   # (1, 3*HP)

    r = jax.nn.sigmoid(gi[:, 0:hp] + gh[:, 0:hp])
    z = jax.nn.sigmoid(gi[:, hp:2 * hp] + gh[:, hp:2 * hp])
    n = jnp.tanh(gi[:, 2 * hp:3 * hp] + r * gh[:, 2 * hp:3 * hp])

    h_new = n + z * (h - n)                       # == (1 - z) * n + z * h

    h_state[...] = h_new
    out_ref[...] = h_new[None]                    # (1, 1, HP), lane-dense store


# --------------------------------------------------------------------------- #
# Wrappers
# --------------------------------------------------------------------------- #
def encoder_rnn_encode(tokens, hidden, packed):
    """Run the GRU over a whole token sequence in ONE pallas_call.

    tokens: (seq_len, 1, 1) f32, hidden: (1, 1, H) f32
    returns (outputs (seq_len, 1, H), final_hidden (1, 1, H))
    """
    wx, wh, bx, bh = packed["wx"], packed["wh"], packed["bx"], packed["bh"]
    hp, h_dim = packed["HP"], packed["H"]
    g = 3 * hp
    seq_len = tokens.shape[0]

    x = tokens.reshape(seq_len).astype(jnp.float32)               # scalar/step
    h0 = jnp.zeros((1, hp), jnp.float32).at[:, :h_dim].set(
        hidden.reshape(1, h_dim).astype(jnp.float32))

    out = pl.pallas_call(
        functools.partial(_gru_seq_kernel, hp=hp),
        out_shape=jax.ShapeDtypeStruct((seq_len, 1, hp), jnp.float32),
        grid=(seq_len,),
        in_specs=[
            pl.BlockSpec(memory_space=pltpu.MemorySpace.SMEM),  # tokens -> SMEM
            pl.BlockSpec((1, hp), lambda t: (0, 0)),            # h0 (read once)
            pl.BlockSpec((1, g), lambda t: (0, 0)),             # wx, resident
            pl.BlockSpec((hp, g), lambda t: (0, 0)),            # wh, resident
            pl.BlockSpec((1, g), lambda t: (0, 0)),             # bx, resident
            pl.BlockSpec((1, g), lambda t: (0, 0)),             # bh, resident
        ],
        out_specs=pl.BlockSpec((1, 1, hp), lambda t: (t, 0, 0)),
        scratch_shapes=[pltpu.VMEM((1, hp), jnp.float32)],      # carried hidden
        compiler_params=pltpu.CompilerParams(
            dimension_semantics=("arbitrary",)),                # sequential recurrence
    )(x, h0, wx, wh, bx, bh)

    outputs = out[:, :, :h_dim]                                 # (seq_len, 1, H)
    final_hidden = outputs[-1].reshape(1, 1, h_dim)
    return outputs, final_hidden


def encoder_rnn_forward(inp, hidden, packed):
    """Single GRU step — exactly EncoderRNN.forward(input, hidden)."""
    outputs, new_hidden = encoder_rnn_encode(inp.reshape(1, 1, 1), hidden, packed)
    return outputs.reshape(1, 1, packed["H"]), new_hidden


# --------------------------------------------------------------------------- #
# Parameters (PyTorch GRU layout) + packing into the padded kernel layout
# --------------------------------------------------------------------------- #
def init_gru_params(key, input_size, hidden_size):
    """PyTorch nn.GRU-shaped parameters: w_ih (3H,in), w_hh (3H,H), b (3H,)."""
    bound = 1.0 / float(hidden_size) ** 0.5
    k1, k2, k3, k4 = jax.random.split(key, 4)
    w_ih = jax.random.uniform(k1, (3 * hidden_size, input_size),
                              minval=-bound, maxval=bound, dtype=jnp.float32)
    w_hh = jax.random.uniform(k2, (3 * hidden_size, hidden_size),
                              minval=-bound, maxval=bound, dtype=jnp.float32)
    b_ih = jax.random.uniform(k3, (3 * hidden_size,),
                              minval=-bound, maxval=bound, dtype=jnp.float32)
    b_hh = jax.random.uniform(k4, (3 * hidden_size,),
                              minval=-bound, maxval=bound, dtype=jnp.float32)
    return w_ih, w_hh, b_ih, b_hh


def pack_gru_params(w_ih, w_hh, b_ih, b_hh, hidden_size):
    """Pre-transpose per gate [r,z,n], pad each gate to LANE lanes, zero-fill."""
    h_dim = hidden_size
    hp = max(LANE, ((h_dim + LANE - 1) // LANE) * LANE)
    in_size = w_ih.shape[1]

    wx = jnp.zeros((in_size, 3 * hp), jnp.float32)
    wh = jnp.zeros((hp, 3 * hp), jnp.float32)
    bx = jnp.zeros((1, 3 * hp), jnp.float32)
    bh = jnp.zeros((1, 3 * hp), jnp.float32)
    for gate in range(3):
        rows = slice(gate * h_dim, (gate + 1) * h_dim)
        cols = slice(gate * hp, gate * hp + h_dim)
        wx = wx.at[:, cols].set(w_ih[rows, :].T)
        wh = wh.at[:h_dim, cols].set(w_hh[rows, :].T)
        bx = bx.at[0, cols].set(b_ih[rows])
        bh = bh.at[0, cols].set(b_hh[rows])
    return {"wx": wx, "wh": wh, "bx": bx, "bh": bh, "HP": hp, "H": h_dim}


# --------------------------------------------------------------------------- #
# Pure-JAX reference (PyTorch GRU semantics) for correctness check
# --------------------------------------------------------------------------- #
def gru_reference(tokens, hidden, torch_params):
    w_ih, w_hh, b_ih, b_hh = torch_params
    h_dim = hidden.shape[-1]
    h = hidden.reshape(1, h_dim)
    outs = []
    for t in range(tokens.shape[0]):
        x = tokens[t].reshape(1, -1)
        gi = x @ w_ih.T + b_ih
        gh = h @ w_hh.T + b_hh
        i_r, i_z, i_n = jnp.split(gi, 3, axis=-1)
        h_r, h_z, h_n = jnp.split(gh, 3, axis=-1)
        r = jax.nn.sigmoid(i_r + h_r)
        z = jax.nn.sigmoid(i_z + h_z)
        n = jnp.tanh(i_n + r * h_n)
        h = (1.0 - z) * n + z * h
        outs.append(h)
    return jnp.stack(outs).reshape(-1, 1, h_dim), h.reshape(1, 1, h_dim)


# --------------------------------------------------------------------------- #
if __name__ == "__main__":
    input_size = 1        # forced by input.view(1, 1, 1) in the PyTorch forward
    hidden_size = 32
    seq_len = 8

    key = jax.random.PRNGKey(0)
    kp, kx = jax.random.split(key, 2)

    torch_params = init_gru_params(kp, input_size, hidden_size)
    packed = pack_gru_params(*torch_params, hidden_size=hidden_size)

    tokens = jax.random.normal(kx, (seq_len, 1, 1), dtype=jnp.float32)
    hidden0 = jnp.zeros((1, 1, hidden_size), dtype=jnp.float32)   # initHidden()

    # Whole-sequence encode: one pallas_call, weights VMEM-resident across steps.
    outputs, hidden = encoder_rnn_encode(tokens, hidden0, packed)
    jax.block_until_ready((outputs, hidden))

    # Single-step call matching EncoderRNN.forward(input, hidden) exactly.
    out1, hid1 = encoder_rnn_forward(tokens[0], hidden0, packed)
    jax.block_until_ready((out1, hid1))

    assert outputs.shape == (seq_len, 1, hidden_size)
    assert hidden.shape == (1, 1, hidden_size)
    assert out1.shape == (1, 1, hidden_size) and hid1.shape == (1, 1, hidden_size)

    # Numerical check against pure-JAX PyTorch-semantics GRU.
    ref_outs, ref_h = gru_reference(tokens, hidden0, torch_params)
    assert bool(jnp.allclose(outputs, ref_outs, atol=1e-4, rtol=1e-4))
    assert bool(jnp.allclose(hidden, ref_h, atol=1e-4, rtol=1e-4))
    assert bool(jnp.allclose(out1, ref_outs[0:1], atol=1e-4, rtol=1e-4))
    assert bool(jnp.allclose(out1, hid1))

    print("KERNEL_OK")
</pallas_src>

<mosaic_0001>
module attributes {stable_mosaic.version = 11 : i64} {
  func.func @_gru_seq_kernel(%arg0: i32, %arg1: memref<8xf32, #tpu.memory_space<smem>>, %arg2: memref<1x128xf32, #tpu.memory_space<vmem>>, %arg3: memref<1x384xf32, #tpu.memory_space<vmem>>, %arg4: memref<128x384xf32, #tpu.memory_space<vmem>>, %arg5: memref<1x384xf32, #tpu.memory_space<vmem>>, %arg6: memref<1x384xf32, #tpu.memory_space<vmem>>, %arg7: memref<1x1x128xf32, #tpu.memory_space<vmem>>, %arg8: memref<1x128xf32, #tpu.memory_space<vmem>>) attributes {dimension_semantics = [#tpu.dimension_semantics<arbitrary>], iteration_bounds = array<i64: 8>, scalar_prefetch = 0 : i64, scratch_operands = 1 : i64, tpu.core_type = #tpu.core_type<tc>, window_params = [{transform_indices = @transform_0, window_bounds = array<i64: 8>}, {pipeline_mode = #tpu.pipeline_mode<synchronous>, transform_indices = @transform_1, window_bounds = array<i64: 1, 128>}, {pipeline_mode = #tpu.pipeline_mode<synchronous>, transform_indices = @transform_2, window_bounds = array<i64: 1, 384>}, {pipeline_mode = #tpu.pipeline_mode<synchronous>, transform_indices = @transform_3, window_bounds = array<i64: 128, 384>}, {pipeline_mode = #tpu.pipeline_mode<synchronous>, transform_indices = @transform_4, window_bounds = array<i64: 1, 384>}, {pipeline_mode = #tpu.pipeline_mode<synchronous>, transform_indices = @transform_5, window_bounds = array<i64: 1, 384>}, {transform_indices = @transform_6, window_bounds = array<i64: 1, 1, 128>}]} {
    %c0_i32 = arith.constant 0 : i32
    %0 = arith.cmpi eq, %arg0, %c0_i32 : i32
    %1 = arith.extui %0 : i1 to i32
    %c0_i32_0 = arith.constant 0 : i32
    %2 = arith.cmpi ne, %1, %c0_i32_0 : i32
    scf.if %2 {
      %c0_17 = arith.constant 0 : index
      %c0_18 = arith.constant 0 : index
      %42 = vector.load %arg2[%c0_17, %c0_18] : memref<1x128xf32, #tpu.memory_space<vmem>>, vector<1x128xf32>
      %c0_19 = arith.constant 0 : index
      %c0_20 = arith.constant 0 : index
      %43 = vector.load %arg8[%c0_19, %c0_20] : memref<1x128xf32, #tpu.memory_space<vmem>>, vector<1x128xf32>
      tpu.vector_store %arg8[%c0_19, %c0_20], %42 {strides = array<i32>} : memref<1x128xf32, #tpu.memory_space<vmem>>, vector<1x128xf32>,
    } else {
    }
    %c0 = arith.constant 0 : index
    %c0_1 = arith.constant 0 : index
    %3 = vector.load %arg8[%c0, %c0_1] : memref<1x128xf32, #tpu.memory_space<vmem>>, vector<1x128xf32>
    %4 = arith.index_cast %arg0 : i32 to index
    %5 = memref.load %arg1[%4] : memref<8xf32, #tpu.memory_space<smem>>
    %c0_2 = arith.constant 0 : index
    %c0_3 = arith.constant 0 : index
    %6 = vector.load %arg3[%c0_2, %c0_3] : memref<1x384xf32, #tpu.memory_space<vmem>>, vector<1x384xf32>
    %7 = vector.broadcast %5 : f32 to vector<1x384xf32>
    %8 = arith.mulf %7, %6 : vector<1x384xf32>
    %c0_4 = arith.constant 0 : index
    %c0_5 = arith.constant 0 : index
    %9 = vector.load %arg5[%c0_4, %c0_5] : memref<1x384xf32, #tpu.memory_space<vmem>>, vector<1x384xf32>
    %10 = arith.addf %8, %9 : vector<1x384xf32>
    %c0_6 = arith.constant 0 : index
    %c0_7 = arith.constant 0 : index
    %11 = vector.load %arg4[%c0_6, %c0_7] : memref<128x384xf32, #tpu.memory_space<vmem>>, vector<128x384xf32>
    %cst = arith.constant dense<0.000000e+00> : vector<1x384xf32>
    %12 = tpu.matmul %3, %11, %cst {dimension_numbers = #tpu.dot_dimension_numbers<[1], [0], [0], [1], [0, 0, 1, 1], [], []>} : vector<1x128xf32>, vector<128x384xf32>, vector<1x384xf32> -> vector<1x384xf32>
    %c0_8 = arith.constant 0 : index
    %c0_9 = arith.constant 0 : index
    %13 = vector.load %arg6[%c0_8, %c0_9] : memref<1x384xf32, #tpu.memory_space<vmem>>, vector<1x384xf32>
    %14 = arith.addf %12, %13 : vector<1x384xf32>
    %15 = vector.extract_strided_slice %10 {offsets = [0, 0], sizes = [1, 128], strides = [1, 1]} : vector<1x384xf32> to vector<1x128xf32>
    %16 = vector.extract_strided_slice %14 {offsets = [0, 0], sizes = [1, 128], strides = [1, 1]} : vector<1x384xf32> to vector<1x128xf32>
    %17 = arith.addf %15, %16 : vector<1x128xf32>
    %18 = arith.negf %17 : vector<1x128xf32>
    %19 = math.exp %18 : vector<1x128xf32>
    %cst_10 = arith.constant 1.000000e+00 : f32
    %20 = vector.broadcast %cst_10 : f32 to vector<1x128xf32>
    %21 = arith.addf %20, %19 : vector<1x128xf32>
    %22 = arith.divf %20, %21 : vector<1x128xf32>
    %23 = vector.extract_strided_slice %10 {offsets = [0, 128], sizes = [1, 128], strides = [1, 1]} : vector<1x384xf32> to vector<1x128xf32>
    %24 = vector.extract_strided_slice %14 {offsets = [0, 128], sizes = [1, 128], strides = [1, 1]} : vector<1x384xf32> to vector<1x128xf32>
    %25 = arith.addf %23, %24 : vector<1x128xf32>
    %26 = arith.negf %25 : vector<1x128xf32>
    %27 = math.exp %26 : vector<1x128xf32>
    %cst_11 = arith.constant 1.000000e+00 : f32
    %28 = vector.broadcast %cst_11 : f32 to vector<1x128xf32>
    %29 = arith.addf %28, %27 : vector<1x128xf32>
    %30 = arith.divf %28, %29 : vector<1x128xf32>
    %31 = vector.extract_strided_slice %10 {offsets = [0, 256], sizes = [1, 128], strides = [1, 1]} : vector<1x384xf32> to vector<1x128xf32>
    %32 = vector.extract_strided_slice %14 {offsets = [0, 256], sizes = [1, 128], strides = [1, 1]} : vector<1x384xf32> to vector<1x128xf32>
    %33 = arith.mulf %22, %32 : vector<1x128xf32>
    %34 = arith.addf %31, %33 : vector<1x128xf32>
    %35 = math.tanh %34 : vector<1x128xf32>
    %36 = arith.subf %3, %35 : vector<1x128xf32>
    %37 = arith.mulf %30, %36 : vector<1x128xf32>
    %38 = arith.addf %35, %37 : vector<1x128xf32>
    %c0_12 = arith.constant 0 : index
    %c0_13 = arith.constant 0 : index
    %39 = vector.load %arg8[%c0_12, %c0_13] : memref<1x128xf32, #tpu.memory_space<vmem>>, vector<1x128xf32>
    tpu.vector_store %arg8[%c0_12, %c0_13], %38 {strides = array<i32>} : memref<1x128xf32, #tpu.memory_space<vmem>>, vector<1x128xf32>,
    %40 = vector.shape_cast %38 : vector<1x128xf32> to vector<1x1x128xf32>
    %c0_14 = arith.constant 0 : index
    %c0_15 = arith.constant 0 : index
    %c0_16 = arith.constant 0 : index
    %41 = vector.load %arg7[%c0_14, %c0_15, %c0_16] : memref<1x1x128xf32, #tpu.memory_space<vmem>>, vector<1x1x128xf32>
    tpu.vector_store %arg7[%c0_14, %c0_15, %c0_16], %40 {strides = array<i32>} : memref<1x1x128xf32, #tpu.memory_space<vmem>>, vector<1x1x128xf32>,
    return
  }
  func.func @transform_0(%arg0: i32) -> i32 {
    %c0_i32 = arith.constant 0 : i32
    %c0_i32_0 = arith.constant 0 : i32
    return %c0_i32 : i32
  }
  func.func @transform_1(%arg0: i32) -> (i32, i32) {
    %c0_i32 = arith.constant 0 : i32
    %c0_i32_0 = arith.constant 0 : i32
    %c0_i32_1 = arith.constant 0 : i32
    return %c0_i32, %c0_i32_0 : i32, i32
  }
  func.func @transform_2(%arg0: i32) -> (i32, i32) {
    %c0_i32 = arith.constant 0 : i32
    %c0_i32_0 = arith.constant 0 : i32
    %c0_i32_1 = arith.constant 0 : i32
    return %c0_i32, %c0_i32_0 : i32, i32
  }
  func.func @transform_3(%arg0: i32) -> (i32, i32) {
    %c0_i32 = arith.constant 0 : i32
    %c0_i32_0 = arith.constant 0 : i32
    %c0_i32_1 = arith.constant 0 : i32
    return %c0_i32, %c0_i32_0 : i32, i32
  }
  func.func @transform_4(%arg0: i32) -> (i32, i32) {
    %c0_i32 = arith.constant 0 : i32
    %c0_i32_0 = arith.constant 0 : i32
    %c0_i32_1 = arith.constant 0 : i32
    return %c0_i32, %c0_i32_0 : i32, i32
  }
  func.func @transform_5(%arg0: i32) -> (i32, i32) {
    %c0_i32 = arith.constant 0 : i32
    %c0_i32_0 = arith.constant 0 : i32
    %c0_i32_1 = arith.constant 0 : i32
    return %c0_i32, %c0_i32_0 : i32, i32
  }
  func.func @transform_6(%arg0: i32) -> (i32, i32, i32) {
    %c0_i32 = arith.constant 0 : i32
    %c0_i32_0 = arith.constant 0 : i32
    %c0_i32_1 = arith.constant 0 : i32
    return %arg0, %c0_i32, %c0_i32_0 : i32, i32, i32
  }
}

</mosaic_0001>

<llo_original>
// kernel: tpu_custom_call.1
$region0: #{tpu_custom_call.1}
  #allocation0 [shape = 'u32[]', space=smem, size = 0x4, offset = 0x4, fixed_abs, tag = 'smem constant byte address 0x4 - core index']
  #allocation1 [shape = 'u32[144,128]{1,0:T(1,128)}', space=vmem, size = 0x12000, scoped, tag = 'internal scratch']
  #allocation2 [shape = 'f32[1,128]{1,0:T(1,128)}', space=vmem, size = 0x200, scoped, tag = 'scratch operand']
  %s0 = inlined_call_operand.hbm [shape: f32[8], index: 0, kind: input, shape index: {}]
  %s1 = inlined_call_operand.vmem [shape: f32[1,128], index: 1, kind: input, shape index: {}]
  %s2 = inlined_call_operand.vmem [shape: f32[1,384], index: 2, kind: input, shape index: {}]
  %s3 = inlined_call_operand.hbm [shape: f32[128,384], index: 3, kind: input, shape index: {}]
  %s4 = inlined_call_operand.vmem [shape: f32[1,384], index: 4, kind: input, shape index: {}]
  %s5 = inlined_call_operand.vmem [shape: f32[1,384], index: 5, kind: input, shape index: {}]
  %s6 = inlined_call_operand.hbm [shape: f32[8,1,128], index: 6, kind: output, shape index: {}]
  %s7 = sld [smem:[#allocation0]]
  $region69: #{tpu_custom_call.1} parent=0
    _
  %s9 = ssub.s32 1, %s7
  %s10 = scalar_select 0, %s9, %s7
  $region1: #{tpu_custom_call.1} parent=0
    #allocation3 [shape = 'u8[512]{0}', space=smem, size = 0x200, scoped, tag = 'input window, operand 0, single buffered']
    #allocation4 [shape = 's32[2]{0}', space=sflag, size = 0x8, scoped, tag = 'scoped memory for tpu_custom_call.1']
    #allocation5 [shape = 's32[2]{0}', space=sflag, size = 0x8, scoped, tag = 'scoped memory for tpu_custom_call.1']
    #allocation6 [shape = 's32[2]{0}', space=sflag, size = 0x8, scoped, tag = 'scoped memory for tpu_custom_call.1']
    #allocation7 [shape = 'u8[196608]{0}', space=vmem, size = 0x30000, scoped, tag = 'input window, operand 3, single buffered']
    #allocation8 [shape = 'u8[1024]{0}', space=vmem, size = 0x400, scoped, tag = 'output window, operand 0']
    %11 = vsyncpa [#allocation6], 0
    %12 = vsyncpa [#allocation4], 0
    %13 = vsyncpa [#allocation5], 0
    %s14 = scalar_lea.sflag [#allocation5], 1
    %15 = vsyncpa %s14, 0
    loop: start=0, step=1, limit=10
    $region2: #{tpu_custom_call.1} parent=1 // loop_pre_header
      _
    $region3: #{tpu_custom_call.1} parent=1 // loop_header
      %s17 = sphi 0, %s21
      %p18 = scmp.ge.s32.totalorder %s17, 10
      %s25 = sphi 0, %s25
      %s27 = sphi 0, %s25
      %s28 = sphi 0, %s27
      %s42 = sphi 0, %s28
      %s46 = sphi 0, %s46
      %s48 = sphi 0, %s46
      %s49 = sphi 0, %s48
      %s63 = sphi 0, %s49
      %s67 = sphi 0, %s67
      %s69 = sphi 0, %s67
      %s70 = sphi 0, %s69
      %s84 = sphi 0, %s70
      %s88 = sphi 0, %s88
      %s90 = sphi 0, %s88
      %s91 = sphi 0, %s90
      %s105 = sphi 0, %s91
      %s109 = sphi 0, %s109
      %s111 = sphi 0, %s109
      %s112 = sphi 0, %s111
      %s126 = sphi 0, %s112
      %s130 = sphi 0, %s130
      %s132 = sphi 0, %s130
      %s133 = sphi 0, %s132
      %s147 = sphi 0, %s133
      %s153 = sphi 0, %s155
      %s156 = sphi 0, %s153
      %s157 = sphi 0, %s156
      %s173 = sphi 0, %s157
    $region4: #{tpu_custom_call.1} parent=1 // loop_header_branch
      %20 = sbr.rel (%p18) target = $region8
    $region5: #{tpu_custom_call.1} parent=1 // loop_body
      %s22 = ssub.s32 %s17, 1
      %s23 = ssub.s32 %s17, 2
      %s24 = sadd.s32 %s17, 1
      %s26 = sadd.s32 %s25, 1
      %p29 = scmp.eq.s32.totalorder %s17, 7
      %p30 = scmp.ne.s32.totalorder %s25, %s27
      %p31 = scmp.eq.s32.totalorder %s17, 0
      %p32 = por %p30, %p31
      %p33 = scmp.ne.s32.totalorder %s25, %s27
      %p34 = scmp.eq.s32.totalorder %s22, 7
      %p35 = por %p33, %p34
      %p36 = scmp.ne.s32.totalorder %s27, %s28
      %p37 = scmp.eq.s32.totalorder %s22, 0
      %p38 = por %p36, %p37
      %p39 = scmp.ne.s32.totalorder %s27, %s28
      %p40 = scmp.eq.s32.totalorder %s23, 7
      %p41 = por %p39, %p40
      %p43 = scmp.ne.s32.totalorder %s28, %s42
      %p44 = scmp.eq.s32.totalorder %s23, 0
      %p45 = por %p43, %p44
      %s47 = sadd.s32 %s46, 1
      %p50 = scmp.eq.s32.totalorder %s17, 7
      %p51 = scmp.ne.s32.totalorder %s46, %s48
      %p52 = scmp.eq.s32.totalorder %s17, 0
      %p53 = por %p51, %p52
      %p54 = scmp.ne.s32.totalorder %s46, %s48
      %p55 = scmp.eq.s32.totalorder %s22, 7
      %p56 = por %p54, %p55
      %p57 = scmp.ne.s32.totalorder %s48, %s49
      %p58 = scmp.eq.s32.totalorder %s22, 0
      %p59 = por %p57, %p58
      %p60 = scmp.ne.s32.totalorder %s48, %s49
      %p61 = scmp.eq.s32.totalorder %s23, 7
      %p62 = por %p60, %p61
      %p64 = scmp.ne.s32.totalorder %s49, %s63
      %p65 = scmp.eq.s32.totalorder %s23, 0
      %p66 = por %p64, %p65
      %s68 = sadd.s32 %s67, 1
      %p71 = scmp.eq.s32.totalorder %s17, 7
      %p72 = scmp.ne.s32.totalorder %s67, %s69
      %p73 = scmp.eq.s32.totalorder %s17, 0
      %p74 = por %p72, %p73
      %p75 = scmp.ne.s32.totalorder %s67, %s69
      %p76 = scmp.eq.s32.totalorder %s22, 7
      %p77 = por %p75, %p76
      %p78 = scmp.ne.s32.totalorder %s69, %s70
      %p79 = scmp.eq.s32.totalorder %s22, 0
      %p80 = por %p78, %p79
      %p81 = scmp.ne.s32.totalorder %s69, %s70
      %p82 = scmp.eq.s32.totalorder %s23, 7
      %p83 = por %p81, %p82
      %p85 = scmp.ne.s32.totalorder %s70, %s84
      %p86 = scmp.eq.s32.totalorder %s23, 0
      %p87 = por %p85, %p86
      %s89 = sadd.s32 %s88, 1
      %p92 = scmp.eq.s32.totalorder %s17, 7
      %p93 = scmp.ne.s32.totalorder %s88, %s90
      %p94 = scmp.eq.s32.totalorder %s17, 0
      %p95 = por %p93, %p94
      %p96 = scmp.ne.s32.totalorder %s88, %s90
      %p97 = scmp.eq.s32.totalorder %s22, 7
      %p98 = por %p96, %p97
      %p99 = scmp.ne.s32.totalorder %s90, %s91
      %p100 = scmp.eq.s32.totalorder %s22, 0
      %p101 = por %p99, %p100
      %p102 = scmp.ne.s32.totalorder %s90, %s91
      %p103 = scmp.eq.s32.totalorder %s23, 7
      %p104 = por %p102, %p103
      %p106 = scmp.ne.s32.totalorder %s91, %s105
      %p107 = scmp.eq.s32.totalorder %s23, 0
      %p108 = por %p106, %p107
      %s110 = sadd.s32 %s109, 1
      %p113 = scmp.eq.s32.totalorder %s17, 7
      %p114 = scmp.ne.s32.totalorder %s109, %s111
      %p115 = scmp.eq.s32.totalorder %s17, 0
      %p116 = por %p114, %p115
      %p117 = scmp.ne.s32.totalorder %s109, %s111
      %p118 = scmp.eq.s32.totalorder %s22, 7
      %p119 = por %p117, %p118
      %p120 = scmp.ne.s32.totalorder %s111, %s112
      %p121 = scmp.eq.s32.totalorder %s22, 0
      %p122 = por %p120, %p121
      %p123 = scmp.ne.s32.totalorder %s111, %s112
      %p124 = scmp.eq.s32.totalorder %s23, 7
      %p125 = por %p123, %p124
      %p127 = scmp.ne.s32.totalorder %s112, %s126
      %p128 = scmp.eq.s32.totalorder %s23, 0
      %p129 = por %p127, %p128
      %s131 = sadd.s32 %s130, 1
      %p134 = scmp.eq.s32.totalorder %s17, 7
      %p135 = scmp.ne.s32.totalorder %s130, %s132
      %p136 = scmp.eq.s32.totalorder %s17, 0
      %p137 = por %p135, %p136
      %p138 = scmp.ne.s32.totalorder %s130, %s132
      %p139 = scmp.eq.s32.totalorder %s22, 7
      %p140 = por %p138, %p139
      %p141 = scmp.ne.s32.totalorder %s132, %s133
      %p142 = scmp.eq.s32.totalorder %s22, 0
      %p143 = por %p141, %p142
      %p144 = scmp.ne.s32.totalorder %s132, %s133
      %p145 = scmp.eq.s32.totalorder %s23, 7
      %p146 = por %p144, %p145
      %p148 = scmp.ne.s32.totalorder %s133, %s147
      %p149 = scmp.eq.s32.totalorder %s23, 0
      %p150 = por %p148, %p149
      %s151 = ssub.s32 %s17, %s24
      %p152 = scmp.eq.s32.totalorder %s151, 0
      %s154 = sadd.s32 %s153, 1
      %s155 = scalar_select %p152, %s153, %s154
      %p158 = pneg %p152
      %p159 = scmp.eq.s32.totalorder %s17, 7
      %p160 = por %p158, %p159
      %p161 = scmp.ne.s32.totalorder %s153, %s156
      %p162 = scmp.eq.s32.totalorder %s17, 0
      %p163 = por %p161, %p162
      %p164 = scmp.ne.s32.totalorder %s153, %s156
      %p165 = scmp.eq.s32.totalorder %s22, 7
      %p166 = por %p164, %p165
      %p167 = scmp.ne.s32.totalorder %s156, %s157
      %p168 = scmp.eq.s32.totalorder %s22, 0
      %p169 = por %p167, %p168
      %p170 = scmp.ne.s32.totalorder %s156, %s157
      %p171 = scmp.eq.s32.totalorder %s23, 7
      %p172 = por %p170, %p171
      %p174 = scmp.ne.s32.totalorder %s157, %s173
      %p175 = scmp.eq.s32.totalorder %s23, 0
      %p176 = por %p174, %p175
      %p177 = scmp.le.s32.totalorder 1, %s17
      %p178 = scmp.lt.s32.totalorder %s17, 9
      %p179 = pnand %p177, %p178
      %p180 = pneg %p179
      // Predicated region
      $region9: #{tpu_custom_call.1} parent=5 // pred_check
        _
      $region10: #{tpu_custom_call.1} parent=5 // pred_check_branch
        %182 = sbr.rel (%p179) target = $region12
      $region11: #{tpu_custom_call.1} parent=5 // pred_region
        %s183 = ssub.s32 %s17, 1
        // Predicated region
        $region13: #{tpu_custom_call.1} parent=11 // pred_check
          %p184 = pneg %p38
        $region14: #{tpu_custom_call.1} parent=11 // pred_check_branch
          %186 = sbr.rel (%p184) target = $region16
        $region15: #{tpu_custom_call.1} parent=11 // pred_region
          %s188 = ssub.s32 16, 16
          %189 = vsyncadd [#allocation6], %s188
          %192 = dma.hbm_to_smem %s0, 16, [#allocation3], [#allocation6]
        $region16: #{tpu_custom_call.1} parent=11 // pred_fallthru
          _
        // Predicated region
        $region17: #{tpu_custom_call.1} parent=11 // pred_check
          %p193 = pneg %p59
        $region18: #{tpu_custom_call.1} parent=11 // pred_check_branch
          %195 = sbr.rel (%p193) target = $region20
        $region19: #{tpu_custom_call.1} parent=11 // pred_region
          _
        $region20: #{tpu_custom_call.1} parent=11 // pred_fallthru
          _
        // Predicated region
        $region21: #{tpu_custom_call.1} parent=11 // pred_check
          %p196 = pneg %p80
        $region22: #{tpu_custom_call.1} parent=11 // pred_check_branch
          %198 = sbr.rel (%p196) target = $region24
        $region23: #{tpu_custom_call.1} parent=11 // pred_region
          _
        $region24: #{tpu_custom_call.1} parent=11 // pred_fallthru
          _
        // Predicated region
        $region25: #{tpu_custom_call.1} parent=11 // pred_check
          %p199 = pneg %p101
        $region26: #{tpu_custom_call.1} parent=11 // pred_check_branch
          %201 = sbr.rel (%p199) target = $region28
        $region27: #{tpu_custom_call.1} parent=11 // pred_region
          %s203 = ssub.s32 6144, 6144
          %204 = vsyncadd [#allocation4], %s203
          %s205 = sshll.u32 [#allocation7], 4
          %s206 = int_to_ptr.vmem [resolvable:$true] %s205
          %211 = dma.hbm_to_vmem [thread:$0]  %s3, 6144, %s206, [#allocation4], 384, 384, 24
        $region28: #{tpu_custom_call.1} parent=11 // pred_fallthru
          _
        // Predicated region
        $region29: #{tpu_custom_call.1} parent=11 // pred_check
          %p212 = pneg %p122
        $region30: #{tpu_custom_call.1} parent=11 // pred_check_branch
          %214 = sbr.rel (%p212) target = $region32
        $region31: #{tpu_custom_call.1} parent=11 // pred_region
          _
        $region32: #{tpu_custom_call.1} parent=11 // pred_fallthru
          _
        // Predicated region
        $region33: #{tpu_custom_call.1} parent=11 // pred_check
          %p215 = pneg %p143
        $region34: #{tpu_custom_call.1} parent=11 // pred_check_branch
          %217 = sbr.rel (%p215) target = $region36
        $region35: #{tpu_custom_call.1} parent=11 // pred_region
          _
        $region36: #{tpu_custom_call.1} parent=11 // pred_fallthru
          _
      $region12: #{tpu_custom_call.1} parent=5 // pred_fallthru
        _
      %p218 = scmp.lt.s32.totalorder %s17, 8
      // Predicated region
      $region37: #{tpu_custom_call.1} parent=5 // pred_check
        %p219 = pneg %p218
      $region38: #{tpu_custom_call.1} parent=5 // pred_check_branch
        %221 = sbr.rel (%p219) target = $region40
      $region39: #{tpu_custom_call.1} parent=5 // pred_region
        _
      $region40: #{tpu_custom_call.1} parent=5 // pred_fallthru
        _
      %p222 = scmp.le.s32.totalorder 1, %s17
      %p223 = scmp.lt.s32.totalorder %s17, 9
      %p224 = pnand %p222, %p223
      %p225 = pneg %p224
      // Predicated region
      $region41: #{tpu_custom_call.1} parent=5 // pred_check
        _
      $region42: #{tpu_custom_call.1} parent=5 // pred_check_branch
        %227 = sbr.rel (%p224) target = $region44
      $region43: #{tpu_custom_call.1} parent=5 // pred_region
        %s228 = ssub.s32 %s17, 1
        // Predicated region
        $region45: #{tpu_custom_call.1} parent=43 // pred_check
          %p229 = pneg %p38
        $region46: #{tpu_custom_call.1} parent=43 // pred_check_branch
          %231 = sbr.rel (%p229) target = $region48
        $region47: #{tpu_custom_call.1} parent=43 // pred_region
          %232 = dma.done [#allocation6], 16
        $region48: #{tpu_custom_call.1} parent=43 // pred_fallthru
          _
        // Predicated region
        $region49: #{tpu_custom_call.1} parent=43 // pred_check
          %p233 = pneg %p101
        $region50: #{tpu_custom_call.1} parent=43 // pred_check_branch
          %235 = sbr.rel (%p233) target = $region52
        $region51: #{tpu_custom_call.1} parent=43 // pred_region
          %236 = dma.done [#allocation4], 6144
        $region52: #{tpu_custom_call.1} parent=43 // pred_fallthru
          _
        %237 = sfence
        %p238 = pneg %p38
        %p239 = pneg %p35
        %p240 = pneg %p59
        %p241 = pneg %p56
        %p242 = pneg %p80
        %p243 = pneg %p77
        %p244 = pneg %p101
        %p245 = pneg %p98
        %p246 = pneg %p122
        %p247 = pneg %p119
        %p248 = pneg %p143
        %p249 = pneg %p140
        %p250 = pneg %p169
        %p251 = pneg %p166
        %s252 = sand.u32 %s156, 1
        %s253 = scalar_lea.sflag [#allocation5], %s252
        %s254 = sand.u32 %s156, 1
        %s255 = scalar_lea.vmem [#allocation8], %s254
        %p256 = scmp.eq.s32.totalorder %s22, 0
        // Predicated region
        $region53: #{tpu_custom_call.1} parent=43 // pred_check
          %p257 = pneg %p256
        $region54: #{tpu_custom_call.1} parent=43 // pred_check_branch
          %259 = sbr.rel (%p257) target = $region56
        $region55: #{tpu_custom_call.1} parent=43 // pred_region
          %v260 = vld [vmem:[%s1] sm:$0x1]
          %261 = vst [vmem:[#allocation2] sm:$0x1] %v260
        $region56: #{tpu_custom_call.1} parent=43 // pred_fallthru
          _
        %v262 = vld [vmem:[#allocation2] sm:$0x1]
        %s263 = sld [smem:[#allocation3 + %s22]]
        %v264 = vld [vmem:[%s2] sm:$0x7]
        %v265 = vstv %s263
        %v266 = vmul.f32 %v265, %v264
        %v267 = vld [vmem:[%s4] sm:$0x7]
        %v268 = vadd.f32 %v266, %v267
        %v269 = vld [vmem:[#allocation7] sm:$0xff]
        %v270 = vld [vmem:[#allocation7 + $0x8] sm:$0xff]
        %v271 = vld [vmem:[#allocation7 + $0x10] sm:$0xff]
        %v272 = vld [vmem:[#allocation7 + $0x18] sm:$0xff]
        %v273 = vld [vmem:[#allocation7 + $0x20] sm:$0xff]
        %v274 = vld [vmem:[#allocation7 + $0x28] sm:$0xff]
        %v275 = vld [vmem:[#allocation7 + $0x30] sm:$0xff]
        %v276 = vld [vmem:[#allocation7 + $0x38] sm:$0xff]
        %v277 = vld [vmem:[#allocation7 + $0x40] sm:$0xff]
        %v278 = vld [vmem:[#allocation7 + $0x48] sm:$0xff]
        %v279 = vld [vmem:[#allocation7 + $0x50] sm:$0xff]
        %v280 = vld [vmem:[#allocation7 + $0x58] sm:$0xff]
        %v281 = vld [vmem:[#allocation7 + $0x60] sm:$0xff]
        %v282 = vld [vmem:[#allocation7 + $0x68] sm:$0xff]
        %v283 = vld [vmem:[#allocation7 + $0x70] sm:$0xff]
        %v284 = vld [vmem:[#allocation7 + $0x78] sm:$0xff]
        %v285 = vld [vmem:[#allocation7 + $0x80] sm:$0xff]
        %v286 = vld [vmem:[#allocation7 + $0x88] sm:$0xff]
        %v287 = vld [vmem:[#allocation7 + $0x90] sm:$0xff]
        %v288 = vld [vmem:[#allocation7 + $0x98] sm:$0xff]
        %v289 = vld [vmem:[#allocation7 + $0xa0] sm:$0xff]
        %v290 = vld [vmem:[#allocation7 + $0xa8] sm:$0xff]
        %v291 = vld [vmem:[#allocation7 + $0xb0] sm:$0xff]
        %v292 = vld [vmem:[#allocation7 + $0xb8] sm:$0xff]
        %v293 = vld [vmem:[#allocation7 + $0xc0] sm:$0xff]
        %v294 = vld [vmem:[#allocation7 + $0xc8] sm:$0xff]
        %v295 = vld [vmem:[#allocation7 + $0xd0] sm:$0xff]
        %v296 = vld [vmem:[#allocation7 + $0xd8] sm:$0xff]
        %v297 = vld [vmem:[#allocation7 + $0xe0] sm:$0xff]
        %v298 = vld [vmem:[#allocation7 + $0xe8] sm:$0xff]
        %v299 = vld [vmem:[#allocation7 + $0xf0] sm:$0xff]
        %v300 = vld [vmem:[#allocation7 + $0xf8] sm:$0xff]
        %v301 = vld [vmem:[#allocation7 + $0x100] sm:$0xff]
        %v302 = vld [vmem:[#allocation7 + $0x108] sm:$0xff]
        %v303 = vld [vmem:[#allocation7 + $0x110] sm:$0xff]
        %v304 = vld [vmem:[#allocation7 + $0x118] sm:$0xff]
        %v305 = vld [vmem:[#allocation7 + $0x120] sm:$0xff]
        %v306 = vld [vmem:[#allocation7 + $0x128] sm:$0xff]
        %v307 = vld [vmem:[#allocation7 + $0x130] sm:$0xff]
        %v308 = vld [vmem:[#allocation7 + $0x138] sm:$0xff]
        %v309 = vld [vmem:[#allocation7 + $0x140] sm:$0xff]
        %v310 = vld [vmem:[#allocation7 + $0x148] sm:$0xff]
        %v311 = vld [vmem:[#allocation7 + $0x150] sm:$0xff]
        %v312 = vld [vmem:[#allocation7 + $0x158] sm:$0xff]
        %v313 = vld [vmem:[#allocation7 + $0x160] sm:$0xff]
        %v314 = vld [vmem:[#allocation7 + $0x168] sm:$0xff]
        %v315 = vld [vmem:[#allocation7 + $0x170] sm:$0xff]
        %v316 = vld [vmem:[#allocation7 + $0x178] sm:$0xff]
        %v317 = vld [vmem:[%s5] sm:$0x7]
        %v319 = vlaneseq
        %v320 = vshrl.u32 %v319, 7
        %v321 = vsub.s32 0, %v320
        %v322 = vrot.slane %v317, %v321
        %v323 = vlaneseq
        %v324 = vshrl.u32 %v323, 7
        %v325 = vsub.s32 1, %v324
        %v326 = vrot.slane %v317, %v325
        %v327 = vlaneseq
        %v328 = vshrl.u32 %v327, 7
        %v329 = vsub.s32 2, %v328
        %v330 = vrot.slane %v317, %v329
        %334 = vmatprep.subr.mxu0 %v270
        %335 = vmatpush1.msra.mxu0 %v269
        %336 = vmatprep.subr.mxu0 %v273
        %337 = vmatpush1.msra.mxu0 %v272
        %338 = vmatprep.subr.mxu0 %v276
        %339 = vmatpush1.msra.mxu0 %v275
        %340 = vmatprep.subr.mxu0 %v279
        %341 = vmatpush1.msra.mxu0 %v278
        %342 = vmatprep.subr.mxu0 %v282
        %343 = vmatpush1.msra.mxu0 %v281
        %344 = vmatprep.subr.mxu0 %v285
        %345 = vmatpush1.msra.mxu0 %v284
        %346 = vmatprep.subr.mxu0 %v288
        %347 = vmatpush1.msra.mxu0 %v287
        %348 = vmatprep.subr.mxu0 %v291
        %349 = vmatpush1.msra.mxu0 %v290
        %350 = vmatprep.subr.mxu0 %v294
        %351 = vmatpush1.msra.mxu0 %v293
        %352 = vmatprep.subr.mxu0 %v297
        %353 = vmatpush1.msra.mxu0 %v296
        %354 = vmatprep.subr.mxu0 %v300
        %355 = vmatpush1.msra.mxu0 %v299
        %356 = vmatprep.subr.mxu0 %v303
        %357 = vmatpush1.msra.mxu0 %v302
        %358 = vmatprep.subr.mxu0 %v306
        %359 = vmatpush1.msra.mxu0 %v305
        %360 = vmatprep.subr.mxu0 %v309
        %361 = vmatpush1.msra.mxu0 %v308
        %362 = vmatprep.subr.mxu0 %v312
        %363 = vmatpush1.msra.mxu0 %v311
        %364 = vmatprep.subr.mxu0 %v315
        %365 = vmatpush1.msra.mxu0 %v314
        %366 = vmatprep.subr.mxu0 0.0
        %367 = vmatpush1.msra.mxu0 0.0
        %368 = vmatprep.subr.mxu0 0.0
        %369 = vmatpush1.msra.mxu0 0.0
        %370 = vmatprep.subr.mxu0 0.0
        %371 = vmatpush1.msra.mxu0 0.0
        %372 = vmatprep.subr.mxu0 0.0
        %373 = vmatpush1.msra.mxu0 0.0
        %374 = vmatprep.subr.mxu0 0.0
        %375 = vmatpush1.msra.mxu0 0.0
        %376 = vmatprep.subr.mxu0 0.0
        %377 = vmatpush1.msra.mxu0 0.0
        %378 = vmatprep.subr.mxu0 0.0
        %379 = vmatpush1.msra.mxu0 0.0
        %380 = vmatprep.subr.mxu0 0.0
        %381 = vmatpush1.msra.mxu0 0.0
        %382 = vmatprep.subr.mxu0 0.0
        %383 = vmatpush1.msra.mxu0 0.0
        %384 = vmatprep.subr.mxu0 0.0
        %385 = vmatpush1.msra.mxu0 0.0
        %386 = vmatprep.subr.mxu0 0.0
        %387 = vmatpush1.msra.mxu0 0.0
        %388 = vmatprep.subr.mxu0 0.0
        %389 = vmatpush1.msra.mxu0 0.0
        %390 = vmatprep.subr.mxu0 0.0
        %391 = vmatpush1.msra.mxu0 0.0
        %392 = vmatprep.subr.mxu0 0.0
        %393 = vmatpush1.msra.mxu0 0.0
        %394 = vmatprep.subr.mxu0 0.0
        %395 = vmatpush1.msra.mxu0 0.0
        %396 = vmatprep.subr.mxu0 0.0
        %397 = vmatpush1.msra.mxu0 0.0
        %398 = vmatprep.mubr.f32.mxu0 0.0
        %399 = vmatmul.mubr.f32.gmra.mrb[0].mxu0 %v262
        %v400 = vpop.f32.mrb[0].mxu0
        %v401 = vadd.f32 %v322, %v400
        %v402 = vpop.f32.mrb[0].mxu0
        %v403 = vadd.f32 %v326, %v402
        %404 = vdwg.mxu0
        %405 = vmatprep.subr.mxu0 0.0
        %406 = vmatpush1.msra.mxu0 %v271
        %407 = vmatprep.subr.mxu0 0.0
        %408 = vmatpush1.msra.mxu0 %v274
        %409 = vmatprep.subr.mxu0 0.0
        %410 = vmatpush1.msra.mxu0 %v277
        %411 = vmatprep.subr.mxu0 0.0
        %412 = vmatpush1.msra.mxu0 %v280
        %413 = vmatprep.subr.mxu0 0.0
        %414 = vmatpush1.msra.mxu0 %v283
        %415 = vmatprep.subr.mxu0 0.0
        %416 = vmatpush1.msra.mxu0 %v286
        %417 = vmatprep.subr.mxu0 0.0
        %418 = vmatpush1.msra.mxu0 %v289
        %419 = vmatprep.subr.mxu0 0.0
        %420 = vmatpush1.msra.mxu0 %v292
        %421 = vmatprep.subr.mxu0 0.0
        %422 = vmatpush1.msra.mxu0 %v295
        %423 = vmatprep.subr.mxu0 0.0
        %424 = vmatpush1.msra.mxu0 %v298
        %425 = vmatprep.subr.mxu0 0.0
        %426 = vmatpush1.msra.mxu0 %v301
        %427 = vmatprep.subr.mxu0 0.0
        %428 = vmatpush1.msra.mxu0 %v304
        %429 = vmatprep.subr.mxu0 0.0
        %430 = vmatpush1.msra.mxu0 %v307
        %431 = vmatprep.subr.mxu0 0.0
        %432 = vmatpush1.msra.mxu0 %v310
        %433 = vmatprep.subr.mxu0 0.0
        %434 = vmatpush1.msra.mxu0 %v313
        %435 = vmatprep.subr.mxu0 0.0
        %436 = vmatpush1.msra.mxu0 %v316
        %437 = vmatprep.subr.mxu0 0.0
        %438 = vmatpush1.msra.mxu0 0.0
        %439 = vmatprep.subr.mxu0 0.0
        %440 = vmatpush1.msra.mxu0 0.0
        %441 = vmatprep.subr.mxu0 0.0
        %442 = vmatpush1.msra.mxu0 0.0
        %443 = vmatprep.subr.mxu0 0.0
        %444 = vmatpush1.msra.mxu0 0.0
        %445 = vmatprep.subr.mxu0 0.0
        %446 = vmatpush1.msra.mxu0 0.0
        %447 = vmatprep.subr.mxu0 0.0
        %448 = vmatpush1.msra.mxu0 0.0
        %449 = vmatprep.subr.mxu0 0.0
        %450 = vmatpush1.msra.mxu0 0.0
        %451 = vmatprep.subr.mxu0 0.0
        %452 = vmatpush1.msra.mxu0 0.0
        %453 = vmatprep.subr.mxu0 0.0
        %454 = vmatpush1.msra.mxu0 0.0
        %455 = vmatprep.subr.mxu0 0.0
        %456 = vmatpush1.msra.mxu0 0.0
        %457 = vmatprep.subr.mxu0 0.0
        %458 = vmatpush1.msra.mxu0 0.0
        %459 = vmatprep.subr.mxu0 0.0
        %460 = vmatpush1.msra.mxu0 0.0
        %461 = vmatprep.subr.mxu0 0.0
        %462 = vmatpush1.msra.mxu0 0.0
        %463 = vmatprep.subr.mxu0 0.0
        %464 = vmatpush1.msra.mxu0 0.0
        %465 = vmatprep.subr.mxu0 0.0
        %466 = vmatpush1.msra.mxu0 0.0
        %467 = vmatprep.subr.mxu0 0.0
        %468 = vmatpush1.msra.mxu0 0.0
        %469 = vmatprep.mubr.f32.mxu0 0.0
        %470 = vmatmul.mubr.f32.gmra.mrb[0].mxu0 %v262
        %v471 = vpop.f32.mrb[0].mxu0
        %v472 = vadd.f32 %v330, %v471
        %v473 = vpop.f32.mrb[0].mxu0
        %474 = vdwg.mxu0
        %v475 = vadd.f32 %v268, %v401
        %v476 = vxor.u32 %v475, 2147483648
        %v477 = vmul.f32 %v476, 1.442695
        %v478 = vpow.pop %v477
        %v479 = vadd.f32 %v478, 1.0
        %v480 = vrcp.pop %v479
        %v481 = vmul.f32 1.0, %v480
        %v483 = vrot.slane %v268, 1
        %v485 = vadd.f32 %v483, %v403
        %v486 = vxor.u32 %v485, 2147483648
        %v487 = vmul.f32 %v486, 1.442695
        %v488 = vpow.pop %v487
        %v489 = vadd.f32 %v488, 1.0
        %v490 = vrcp.pop %v489
        %v491 = vmul.f32 1.0, %v490
        %v492 = vmul.f32 %v481, %v472
        %v493 = vrot.slane %v268, 2
        %v495 = vadd.f32 %v493, %v492
        %v496 = vtanh.pop %v495
        %v497 = vsub.f32 %v262, %v496
        %v498 = vmul.f32 %v491, %v497
        %v499 = vadd.f32 %v496, %v498
        %500 = vst [vmem:[#allocation2] sm:$0x1] %v499
        %501 = vst [vmem:[%s255] sm:$0x1] %v499
        %s502 = sand.u32 %s156, 1
        %s503 = scalar_lea.sflag [#allocation5], %s502
        %s504 = sand.u32 %s156, 1
        %s505 = scalar_lea.vmem [#allocation8], %s504
        // Predicated region
        $region57: #{tpu_custom_call.1} parent=43 // pred_check
          %p506 = pneg %p166
        $region58: #{tpu_custom_call.1} parent=43 // pred_check_branch
          %508 = sbr.rel (%p506) target = $region60
        $region59: #{tpu_custom_call.1} parent=43 // pred_region
          %s510 = ssub.s32 16, 16
          %511 = vsyncadd %s503, %s510
          %s512 = smul.addr %s22, 16
          %s513 = scalar_lea.hbm %s6, %s512
          %s515 = sshll.u32 %s505, 4
          %s516 = int_to_ptr.vmem [resolvable:$true] %s515
          %518 = dma.vmem_to_hbm [thread:$0]  %s516, 16, %s513, %s503
        $region60: #{tpu_custom_call.1} parent=43 // pred_fallthru
          _
      $region44: #{tpu_custom_call.1} parent=5 // pred_fallthru
        _
      %p519 = scmp.le.s32.totalorder 2, %s17
      // Predicated region
      $region61: #{tpu_custom_call.1} parent=5 // pred_check
        %p520 = pneg %p519
      $region62: #{tpu_custom_call.1} parent=5 // pred_check_branch
        %522 = sbr.rel (%p520) target = $region64
      $region63: #{tpu_custom_call.1} parent=5 // pred_region
        %s523 = ssub.s32 %s17, 2
        // Predicated region
        $region65: #{tpu_custom_call.1} parent=63 // pred_check
          %p524 = pneg %p172
        $region66: #{tpu_custom_call.1} parent=63 // pred_check_branch
          %526 = sbr.rel (%p524) target = $region68
        $region67: #{tpu_custom_call.1} parent=63 // pred_region
          %s527 = sand.u32 %s157, 1
          %s528 = scalar_lea.sflag [#allocation5], %s527
          %s529 = sand.u32 %s157, 1
          %s530 = scalar_lea.vmem [#allocation8], %s529
          %531 = dma.done %s528, 16
        $region68: #{tpu_custom_call.1} parent=63 // pred_fallthru
          _
      $region64: #{tpu_custom_call.1} parent=5 // pred_fallthru
        _
    $region6: #{tpu_custom_call.1} parent=1 // loop_footer
      %s21 = sadd.s32 1, %s17
    $region7: #{tpu_custom_call.1} parent=1 // loop_footer_branch
      %16 = sbr.rel target = $region3
    $region8: #{tpu_custom_call.1} parent=1 // loop_exit
      _
    %532 = vsyncpa [#allocation4], 1
    %s533 = scalar_lea.sflag [#allocation4], 1
    %534 = vsyncpa %s533, 1
    %535 = vsyncpa [#allocation5], 1
    %s536 = scalar_lea.sflag [#allocation5], 1
    %537 = vsyncpa %s536, 1
    %538 = vsyncpa [#allocation6], 1
    %s539 = scalar_lea.sflag [#allocation6], 1
    %540 = vsyncpa %s539, 1

</llo_original>
